<compile_context>
chip_gen: v5e
topology: v5e:2x2
jax: 0.10.0
libtpu: 0.0.40
codegen_flags: <defaults>
</compile_context>

<pallas_src>
import functools

import jax
import jax.numpy as jnp
from jax import lax
from jax.experimental import pallas as pl
from jax.experimental.pallas import tpu as pltpu


def _round_up(x, m):
    return ((x + m - 1) // m) * m


def text_cnn_kernel(x_ref, w1_ref, b1_ref, w2_ref, b2_ref, o_ref, shift_ref, *,
                    l_proc):
    """One grid step over rows = groups_per_step * l_proc flattened rows.

    x_ref     : (rows, C1)           bf16, C1 = G*Cin (G samples lane-packed)
    w1_ref    : (3, C1, C2)          bf16 per-tap block-diagonal weight slabs
    w2_ref    : (3, C2, C2)          bf16
    b*_ref    : (1, C2)              f32
    o_ref     : (rows // 2, C2)      bf16 -- pooled rows only
    shift_ref : (rows + 8, max(C1,C2)) f32 scratch used for the +-1 row shifts
                and for the stride-2 max-pool selection.
    """
    rows = x_ref.shape[0]

    # Position of every row inside its sample (each block starts at a multiple
    # of l_proc because rows_per_step = groups_per_step * l_proc).
    pos = lax.broadcasted_iota(jnp.int32, (rows, 1), 0) % l_proc
    not_first = pos != 0                 # row l-1 exists (conv pad=1 -> zero)
    not_last = pos != (l_proc - 1)       # row l+1 exists

    def conv3_bias_relu(v_bf16, w_ref, b_ref):
        # v_bf16: (rows, C) bf16 activations of this layer.
        c = v_bf16.shape[1]
        zrow = jnp.zeros((1, c), jnp.float32)
        # Stage the rows at sublane offset 1 so offsets 0 / 2 give the +-1
        # shifted copies with zero borders (conv "same" padding at the edges).
        shift_ref[0:1, :c] = zrow
        shift_ref[pl.ds(1, rows), :c] = v_bf16.astype(jnp.float32)
        shift_ref[rows + 1:rows + 2, :c] = zrow
        prev = jnp.where(not_first, shift_ref[pl.ds(0, rows), :c], 0.0)
        nxt = jnp.where(not_last, shift_ref[pl.ds(2, rows), :c], 0.0)
        # Three accumulating MXU dots (one per tap): bf16 in, f32 accumulate.
        y = jnp.dot(prev.astype(jnp.bfloat16), w_ref[0],
                    preferred_element_type=jnp.float32)
        y = y + jnp.dot(v_bf16, w_ref[1], preferred_element_type=jnp.float32)
        y = y + jnp.dot(nxt.astype(jnp.bfloat16), w_ref[2],
                        preferred_element_type=jnp.float32)
        return jnp.maximum(y + b_ref[...], 0.0)          # bias + ReLU in f32

    y1 = conv3_bias_relu(x_ref[...], w1_ref, b1_ref)                 # (rows, C2)
    y2 = conv3_bias_relu(y1.astype(jnp.bfloat16), w2_ref, b2_ref)    # (rows, C2)

    # MaxPool1d(2) in-kernel: pairwise max of adjacent rows; only the pooled
    # rows are written back to HBM.  Dropout(p=0.5) is identity in eval mode.
    c2 = o_ref.shape[1]
    shift_ref[pl.ds(0, rows), :c2] = y2
    even = shift_ref[pl.ds(0, rows // 2, stride=2), :c2]
    odd = shift_ref[pl.ds(1, rows // 2, stride=2), :c2]
    o_ref[...] = jnp.maximum(even, odd).astype(o_ref.dtype)


def text_cnn_forward(x, w1_oik, b1, w2_oik, b2, max_length, *,
                     target_rows_per_step=1024):
    """x: (B, S, Cin); conv weights in PyTorch Conv1d layout (O, I, K=3)."""
    B, S, Cin = x.shape
    Cout = w1_oik.shape[0]
    assert max_length >= S, "sequence longer than max_length is not supported"
    assert max_length % 2 == 0, "MaxPool1d(2) path assumes an even max_length"

    # Rows the module actually returns, and the number of conv rows per sample
    # needed to produce them exactly (pooled row l needs conv2 rows 2l, 2l+1;
    # each conv row r needs rows r-1..r+1 of the layer below).  Clamp to that
    # instead of always processing max_length rows per sample.
    s_out = min(S, max_length // 2)
    l_proc = min(max_length, _round_up(max(2 * s_out + 2, S), 8))

    # Lane-packing factor: pack G samples along the lane axis so vregs and
    # HBM stores are (close to) 128-lane dense.
    G = 1
    for g in (8, 4, 2):
        if B % g == 0 and g * Cin <= 128 and g * Cout <= 128:
            G = g
            break
    NG = B // G                           # number of lane-packed sample groups
    C1, C2 = G * Cin, G * Cout
    Cmax = max(C1, C2)

    # Groups per grid step: as many rows/step as the budget allows while
    # keeping >= 2 grid steps when possible (v7x has 2 TensorCores) and
    # keeping the pooled-output block sublane-aligned.
    gps = 1
    for d in range(1, NG + 1):
        if NG % d:
            continue
        if NG >= 2 and NG // d < 2:
            continue                      # leave >= 2 parallel steps (dual TC)
        if d * l_proc > target_rows_per_step:
            continue                      # VMEM / tile-size budget
        if NG // d > 1 and (d * (l_proc // 2)) % 8 != 0:
            continue                      # output block must be 8-row aligned
        gps = max(gps, d)
    if NG // gps > 1 and (gps * (l_proc // 2)) % 8 != 0:
        gps = NG                          # fall back to one full-extent block
    grid = (NG // gps,)
    rows_per_step = gps * l_proc

    # ---- host-side layout plumbing (fuses into single XLA passes) ----------
    # Pad the sequence axis to l_proc, cast to bf16 and lane-pack G samples:
    # (B, l_proc, Cin) -> (NG * l_proc, G*Cin).
    x_p = jnp.pad(x, ((0, 0), (0, l_proc - S), (0, 0))).astype(jnp.bfloat16)
    x_pack = (x_p.reshape(NG, G, l_proc, Cin)
                 .transpose(0, 2, 1, 3)
                 .reshape(NG * l_proc, C1))

    def pack_w(w_oik):
        # (O, I, 3) -> per-tap (I, O) -> block-diagonal over G -> (3, G*I, G*O)
        w_kio = jnp.transpose(w_oik, (2, 1, 0)).astype(jnp.float32)
        eye = jnp.eye(G, dtype=jnp.float32)
        blocks = [jnp.kron(eye, w_kio[k]) for k in range(3)]
        return jnp.stack(blocks).astype(jnp.bfloat16)

    w1_bd = pack_w(w1_oik)                              # (3, C1, C2) bf16
    w2_bd = pack_w(w2_oik)                              # (3, C2, C2) bf16
    b1_2d = jnp.tile(b1.astype(jnp.float32), G).reshape(1, C2)
    b2_2d = jnp.tile(b2.astype(jnp.float32), G).reshape(1, C2)

    # VMEM budget: double-buffered bf16 in/out tiles + weights + f32 scratch.
    tile_bytes = (2 * (rows_per_step * C1 + (rows_per_step // 2) * C2) * 2
                  + (w1_bd.size + w2_bd.size) * 2
                  + (b1_2d.size + b2_2d.size) * 4
                  + (rows_per_step + 8) * Cmax * 4)
    vmem_limit = int(min(48 * 2**20, max(16 * 2**20, 2 * tile_bytes)))

    kernel = functools.partial(text_cnn_kernel, l_proc=l_proc)

    out_flat = pl.pallas_call(
        kernel,
        out_shape=jax.ShapeDtypeStruct((NG * (l_proc // 2), C2), jnp.bfloat16),
        grid=grid,
        in_specs=[
            pl.BlockSpec((rows_per_step, C1), lambda i: (i, 0)),
            pl.BlockSpec((3, C1, C2), lambda i: (0, 0, 0)),
            pl.BlockSpec((1, C2), lambda i: (0, 0)),
            pl.BlockSpec((3, C2, C2), lambda i: (0, 0, 0)),
            pl.BlockSpec((1, C2), lambda i: (0, 0)),
        ],
        out_specs=pl.BlockSpec((rows_per_step // 2, C2), lambda i: (i, 0)),
        scratch_shapes=[pltpu.VMEM((rows_per_step + 8, Cmax), jnp.float32)],
        compiler_params=pltpu.CompilerParams(
            dimension_semantics=("parallel",),
            vmem_limit_bytes=vmem_limit),
    )(x_pack, w1_bd, b1_2d, w2_bd, b2_2d)

    # Un-pack the lane-grouped samples and slice to the rows the module returns.
    out = (out_flat.reshape(NG, l_proc // 2, G, Cout)
                   .transpose(0, 2, 1, 3)
                   .reshape(B, l_proc // 2, Cout))
    return out[:, :s_out, :].astype(x.dtype)


def text_cnn_reference(x, w1_oik, b1, w2_oik, b2, max_length):
    """Pure-JAX f32 reference matching the PyTorch forward (eval mode)."""
    B, S, Cin = x.shape
    xp = jnp.pad(x, ((0, 0), (0, max_length - S), (0, 0)))
    xncl = jnp.transpose(xp, (0, 2, 1))                 # (B, Cin, L)

    def conv1d(inp, w, b):
        y = lax.conv_general_dilated(
            inp, w, window_strides=(1,), padding=((1, 1),),
            dimension_numbers=("NCH", "OIH", "NCH"))
        return y + b[None, :, None]

    y = jnp.maximum(conv1d(xncl, w1_oik, b1), 0.0)
    y = jnp.maximum(conv1d(y, w2_oik, b2), 0.0)
    y = lax.reduce_window(y, -jnp.inf, lax.max,
                          window_dimensions=(1, 1, 2),
                          window_strides=(1, 1, 2), padding="VALID")
    y = jnp.transpose(y, (0, 2, 1))
    return y[:, :S, :]


if __name__ == "__main__":
    # Small shapes consistent with the module: batch=2, seq=8, in_c=32,
    # out_c=32, max_length=16 (so pooled length = 8 >= seq).
    B, S, IN_C, OUT_C, MAX_LEN = 2, 8, 32, 32, 16

    key = jax.random.PRNGKey(0)
    kx, kw1, kb1, kw2, kb2 = jax.random.split(key, 5)

    x = jax.random.normal(kx, (B, S, IN_C), dtype=jnp.float32)
    # Deterministic synthetic params (PyTorch Conv1d layout: (out, in, kernel))
    w1 = 0.1 * jax.random.normal(kw1, (OUT_C, IN_C, 3), dtype=jnp.float32)
    b1 = 0.1 * jax.random.normal(kb1, (OUT_C,), dtype=jnp.float32)
    w2 = 0.1 * jax.random.normal(kw2, (OUT_C, OUT_C, 3), dtype=jnp.float32)
    b2 = 0.1 * jax.random.normal(kb2, (OUT_C,), dtype=jnp.float32)

    out = jax.block_until_ready(text_cnn_forward(x, w1, b1, w2, b2, MAX_LEN))
    ref = text_cnn_reference(x, w1, b1, w2, b2, MAX_LEN)

    out_rows = min(S, MAX_LEN // 2)
    assert out.shape == (B, out_rows, OUT_C), out.shape
    # bf16 activations/weights on the MXU vs an all-f32 reference -> relaxed
    # tolerance (rtol covers the ~0.4% relative bf16 rounding).
    max_err = float(jnp.max(jnp.abs(out - ref)))
    assert jnp.allclose(out, ref, atol=5e-2, rtol=5e-2), f"mismatch, max err={max_err}"

    print("KERNEL_OK")
</pallas_src>

<mosaic_0001>
module attributes {stable_mosaic.version = 11 : i64} {
  func.func @text_cnn_kernel(%arg0: i32, %arg1: memref<16x64xbf16, #tpu.memory_space<vmem>>, %arg2: memref<3x64x64xbf16, #tpu.memory_space<vmem>>, %arg3: memref<1x64xf32, #tpu.memory_space<vmem>>, %arg4: memref<3x64x64xbf16, #tpu.memory_space<vmem>>, %arg5: memref<1x64xf32, #tpu.memory_space<vmem>>, %arg6: memref<8x64xbf16, #tpu.memory_space<vmem>>, %arg7: memref<24x64xf32, #tpu.memory_space<vmem>>) attributes {dimension_semantics = [#tpu.dimension_semantics<parallel>], iteration_bounds = array<i64: 1>, scalar_prefetch = 0 : i64, scratch_operands = 1 : i64, tpu.core_type = #tpu.core_type<tc>, window_params = [{transform_indices = @transform_0, window_bounds = array<i64: 16, 64>}, {pipeline_mode = #tpu.pipeline_mode<synchronous>, transform_indices = @transform_1, window_bounds = array<i64: 3, 64, 64>}, {pipeline_mode = #tpu.pipeline_mode<synchronous>, transform_indices = @transform_2, window_bounds = array<i64: 1, 64>}, {pipeline_mode = #tpu.pipeline_mode<synchronous>, transform_indices = @transform_3, window_bounds = array<i64: 3, 64, 64>}, {pipeline_mode = #tpu.pipeline_mode<synchronous>, transform_indices = @transform_4, window_bounds = array<i64: 1, 64>}, {transform_indices = @transform_5, window_bounds = array<i64: 8, 64>}]} {
    %0 = tpu.iota {dimensions = array<i32: 0>} : vector<16x1xi32>
    %c16_i32 = arith.constant 16 : i32
    %c0_i32 = arith.constant 0 : i32
    %1 = arith.cmpi eq, %c16_i32, %c0_i32 : i32
    %c1_i32 = arith.constant 1 : i32
    %2 = arith.select %1, %c1_i32, %c16_i32 : i32
    %3 = vector.broadcast %2 : i32 to vector<16x1xi32>
    %4 = arith.remsi %0, %3 : vector<16x1xi32>
    %c0_i32_0 = arith.constant 0 : i32
    %5 = vector.broadcast %c0_i32_0 : i32 to vector<16x1xi32>
    %6 = arith.cmpi ne, %4, %5 : vector<16x1xi32>
    %c0_i32_1 = arith.constant 0 : i32
    %7 = vector.broadcast %c0_i32_1 : i32 to vector<16x1xi32>
    %8 = arith.cmpi slt, %4, %7 : vector<16x1xi32>
    %c0_i32_2 = arith.constant 0 : i32
    %9 = arith.cmpi slt, %2, %c0_i32_2 : i32
    %10 = vector.broadcast %9 : i1 to vector<16x1xi1>
    %11 = vector.broadcast %10 : vector<16x1xi1> to vector<16x1xi1>
    %12 = arith.xori %8, %11 : vector<16x1xi1>
    %13 = arith.andi %12, %6 : vector<16x1xi1>
    %14 = vector.broadcast %2 : i32 to vector<16x1xi32>
    %15 = arith.addi %4, %14 : vector<16x1xi32>
    %16 = arith.select %13, %15, %4 : vector<16x1xi1>, vector<16x1xi32>
    %c0_i32_3 = arith.constant 0 : i32
    %17 = vector.broadcast %c0_i32_3 : i32 to vector<16x1xi32>
    %18 = arith.cmpi ne, %16, %17 : vector<16x1xi32>
    %c15_i32 = arith.constant 15 : i32
    %19 = vector.broadcast %c15_i32 : i32 to vector<16x1xi32>
    %20 = arith.cmpi ne, %16, %19 : vector<16x1xi32>
    %c0 = arith.constant 0 : index
    %c0_4 = arith.constant 0 : index
    %21 = vector.load %arg1[%c0, %c0_4] : memref<16x64xbf16, #tpu.memory_space<vmem>>, vector<16x64xbf16>
    %cst = arith.constant 0.000000e+00 : f32
    %22 = vector.broadcast %cst : f32 to vector<1x64xf32>
    %c0_5 = arith.constant 0 : index
    %c0_6 = arith.constant 0 : index
    %23 = vector.load %arg7[%c0_5, %c0_6] : memref<24x64xf32, #tpu.memory_space<vmem>>, vector<1x64xf32>
    tpu.vector_store %arg7[%c0_5, %c0_6], %22 {strides = array<i32>} : memref<24x64xf32, #tpu.memory_space<vmem>>, vector<1x64xf32>,
    %24 = arith.extf %21 : vector<16x64xbf16> to vector<16x64xf32>
    %c1 = arith.constant 1 : index
    %c0_7 = arith.constant 0 : index
    %25 = vector.load %arg7[%c1, %c0_7] : memref<24x64xf32, #tpu.memory_space<vmem>>, vector<16x64xf32>
    tpu.vector_store %arg7[%c1, %c0_7], %24 {strides = array<i32>} : memref<24x64xf32, #tpu.memory_space<vmem>>, vector<16x64xf32>,
    %c17 = arith.constant 17 : index
    %c0_8 = arith.constant 0 : index
    %26 = vector.load %arg7[%c17, %c0_8] : memref<24x64xf32, #tpu.memory_space<vmem>>, vector<1x64xf32>
    tpu.vector_store %arg7[%c17, %c0_8], %22 {strides = array<i32>} : memref<24x64xf32, #tpu.memory_space<vmem>>, vector<1x64xf32>,
    %c0_9 = arith.constant 0 : index
    %c0_10 = arith.constant 0 : index
    %27 = vector.load %arg7[%c0_9, %c0_10] : memref<24x64xf32, #tpu.memory_space<vmem>>, vector<16x64xf32>
    %cst_11 = arith.constant 0.000000e+00 : f32
    %28 = vector.shape_cast %18 : vector<16x1xi1> to vector<16x1xi1>
    %29 = vector.broadcast %28 : vector<16x1xi1> to vector<16x64xi1>
    %30 = vector.broadcast %cst_11 : f32 to vector<16x64xf32>
    %31 = arith.select %29, %27, %30 : vector<16x64xi1>, vector<16x64xf32>
    %c2 = arith.constant 2 : index
    %c0_12 = arith.constant 0 : index
    %32 = vector.load %arg7[%c2, %c0_12] : memref<24x64xf32, #tpu.memory_space<vmem>>, vector<16x64xf32>
    %cst_13 = arith.constant 0.000000e+00 : f32
    %33 = vector.shape_cast %20 : vector<16x1xi1> to vector<16x1xi1>
    %34 = vector.broadcast %33 : vector<16x1xi1> to vector<16x64xi1>
    %35 = vector.broadcast %cst_13 : f32 to vector<16x64xf32>
    %36 = arith.select %34, %32, %35 : vector<16x64xi1>, vector<16x64xf32>
    %37 = arith.truncf %31 : vector<16x64xf32> to vector<16x64xbf16>
    %c0_14 = arith.constant 0 : index
    %c0_15 = arith.constant 0 : index
    %c0_16 = arith.constant 0 : index
    %38 = vector.load %arg2[%c0_14, %c0_15, %c0_16] : memref<3x64x64xbf16, #tpu.memory_space<vmem>>, vector<1x64x64xbf16>
    %39 = vector.shape_cast %38 : vector<1x64x64xbf16> to vector<64x64xbf16>
    %cst_17 = arith.constant dense<0.000000e+00> : vector<16x64xf32>
    %40 = tpu.matmul %37, %39, %cst_17 {dimension_numbers = #tpu.dot_dimension_numbers<[1], [0], [0], [1], [0, 0, 1, 1], [], []>} : vector<16x64xbf16>, vector<64x64xbf16>, vector<16x64xf32> -> vector<16x64xf32>
    %c1_18 = arith.constant 1 : index
    %c0_19 = arith.constant 0 : index
    %c0_20 = arith.constant 0 : index
    %41 = vector.load %arg2[%c1_18, %c0_19, %c0_20] : memref<3x64x64xbf16, #tpu.memory_space<vmem>>, vector<1x64x64xbf16>
    %42 = vector.shape_cast %41 : vector<1x64x64xbf16> to vector<64x64xbf16>
    %cst_21 = arith.constant dense<0.000000e+00> : vector<16x64xf32>
    %43 = tpu.matmul %21, %42, %cst_21 {dimension_numbers = #tpu.dot_dimension_numbers<[1], [0], [0], [1], [0, 0, 1, 1], [], []>} : vector<16x64xbf16>, vector<64x64xbf16>, vector<16x64xf32> -> vector<16x64xf32>
    %44 = arith.addf %40, %43 : vector<16x64xf32>
    %45 = arith.truncf %36 : vector<16x64xf32> to vector<16x64xbf16>
    %c2_22 = arith.constant 2 : index
    %c0_23 = arith.constant 0 : index
    %c0_24 = arith.constant 0 : index
    %46 = vector.load %arg2[%c2_22, %c0_23, %c0_24] : memref<3x64x64xbf16, #tpu.memory_space<vmem>>, vector<1x64x64xbf16>
    %47 = vector.shape_cast %46 : vector<1x64x64xbf16> to vector<64x64xbf16>
    %cst_25 = arith.constant dense<0.000000e+00> : vector<16x64xf32>
    %48 = tpu.matmul %45, %47, %cst_25 {dimension_numbers = #tpu.dot_dimension_numbers<[1], [0], [0], [1], [0, 0, 1, 1], [], []>} : vector<16x64xbf16>, vector<64x64xbf16>, vector<16x64xf32> -> vector<16x64xf32>
    %49 = arith.addf %44, %48 : vector<16x64xf32>
    %c0_26 = arith.constant 0 : index
    %c0_27 = arith.constant 0 : index
    %50 = vector.load %arg3[%c0_26, %c0_27] : memref<1x64xf32, #tpu.memory_space<vmem>>, vector<1x64xf32>
    %51 = vector.broadcast %50 : vector<1x64xf32> to vector<16x64xf32>
    %52 = arith.addf %49, %51 : vector<16x64xf32>
    %cst_28 = arith.constant 0.000000e+00 : f32
    %53 = vector.broadcast %cst_28 : f32 to vector<16x64xf32>
    %54 = arith.maximumf %52, %53 : vector<16x64xf32>
    %55 = arith.truncf %54 : vector<16x64xf32> to vector<16x64xbf16>
    %cst_29 = arith.constant 0.000000e+00 : f32
    %56 = vector.broadcast %cst_29 : f32 to vector<1x64xf32>
    %c0_30 = arith.constant 0 : index
    %c0_31 = arith.constant 0 : index
    %57 = vector.load %arg7[%c0_30, %c0_31] : memref<24x64xf32, #tpu.memory_space<vmem>>, vector<1x64xf32>
    tpu.vector_store %arg7[%c0_30, %c0_31], %56 {strides = array<i32>} : memref<24x64xf32, #tpu.memory_space<vmem>>, vector<1x64xf32>,
    %58 = arith.extf %55 : vector<16x64xbf16> to vector<16x64xf32>
    %c1_32 = arith.constant 1 : index
    %c0_33 = arith.constant 0 : index
    %59 = vector.load %arg7[%c1_32, %c0_33] : memref<24x64xf32, #tpu.memory_space<vmem>>, vector<16x64xf32>
    tpu.vector_store %arg7[%c1_32, %c0_33], %58 {strides = array<i32>} : memref<24x64xf32, #tpu.memory_space<vmem>>, vector<16x64xf32>,
    %c17_34 = arith.constant 17 : index
    %c0_35 = arith.constant 0 : index
    %60 = vector.load %arg7[%c17_34, %c0_35] : memref<24x64xf32, #tpu.memory_space<vmem>>, vector<1x64xf32>
    tpu.vector_store %arg7[%c17_34, %c0_35], %56 {strides = array<i32>} : memref<24x64xf32, #tpu.memory_space<vmem>>, vector<1x64xf32>,
    %c0_36 = arith.constant 0 : index
    %c0_37 = arith.constant 0 : index
    %61 = vector.load %arg7[%c0_36, %c0_37] : memref<24x64xf32, #tpu.memory_space<vmem>>, vector<16x64xf32>
    %cst_38 = arith.constant 0.000000e+00 : f32
    %62 = vector.shape_cast %18 : vector<16x1xi1> to vector<16x1xi1>
    %63 = vector.broadcast %62 : vector<16x1xi1> to vector<16x64xi1>
    %64 = vector.broadcast %cst_38 : f32 to vector<16x64xf32>
    %65 = arith.select %63, %61, %64 : vector<16x64xi1>, vector<16x64xf32>
    %c2_39 = arith.constant 2 : index
    %c0_40 = arith.constant 0 : index
    %66 = vector.load %arg7[%c2_39, %c0_40] : memref<24x64xf32, #tpu.memory_space<vmem>>, vector<16x64xf32>
    %cst_41 = arith.constant 0.000000e+00 : f32
    %67 = vector.shape_cast %20 : vector<16x1xi1> to vector<16x1xi1>
    %68 = vector.broadcast %67 : vector<16x1xi1> to vector<16x64xi1>
    %69 = vector.broadcast %cst_41 : f32 to vector<16x64xf32>
    %70 = arith.select %68, %66, %69 : vector<16x64xi1>, vector<16x64xf32>
    %71 = arith.truncf %65 : vector<16x64xf32> to vector<16x64xbf16>
    %c0_42 = arith.constant 0 : index
    %c0_43 = arith.constant 0 : index
    %c0_44 = arith.constant 0 : index
    %72 = vector.load %arg4[%c0_42, %c0_43, %c0_44] : memref<3x64x64xbf16, #tpu.memory_space<vmem>>, vector<1x64x64xbf16>
    %73 = vector.shape_cast %72 : vector<1x64x64xbf16> to vector<64x64xbf16>
    %cst_45 = arith.constant dense<0.000000e+00> : vector<16x64xf32>
    %74 = tpu.matmul %71, %73, %cst_45 {dimension_numbers = #tpu.dot_dimension_numbers<[1], [0], [0], [1], [0, 0, 1, 1], [], []>} : vector<16x64xbf16>, vector<64x64xbf16>, vector<16x64xf32> -> vector<16x64xf32>
    %c1_46 = arith.constant 1 : index
    %c0_47 = arith.constant 0 : index
    %c0_48 = arith.constant 0 : index
    %75 = vector.load %arg4[%c1_46, %c0_47, %c0_48] : memref<3x64x64xbf16, #tpu.memory_space<vmem>>, vector<1x64x64xbf16>
    %76 = vector.shape_cast %75 : vector<1x64x64xbf16> to vector<64x64xbf16>
    %cst_49 = arith.constant dense<0.000000e+00> : vector<16x64xf32>
    %77 = tpu.matmul %55, %76, %cst_49 {dimension_numbers = #tpu.dot_dimension_numbers<[1], [0], [0], [1], [0, 0, 1, 1], [], []>} : vector<16x64xbf16>, vector<64x64xbf16>, vector<16x64xf32> -> vector<16x64xf32>
    %78 = arith.addf %74, %77 : vector<16x64xf32>
    %79 = arith.truncf %70 : vector<16x64xf32> to vector<16x64xbf16>
    %c2_50 = arith.constant 2 : index
    %c0_51 = arith.constant 0 : index
    %c0_52 = arith.constant 0 : index
    %80 = vector.load %arg4[%c2_50, %c0_51, %c0_52] : memref<3x64x64xbf16, #tpu.memory_space<vmem>>, vector<1x64x64xbf16>
    %81 = vector.shape_cast %80 : vector<1x64x64xbf16> to vector<64x64xbf16>
    %cst_53 = arith.constant dense<0.000000e+00> : vector<16x64xf32>
    %82 = tpu.matmul %79, %81, %cst_53 {dimension_numbers = #tpu.dot_dimension_numbers<[1], [0], [0], [1], [0, 0, 1, 1], [], []>} : vector<16x64xbf16>, vector<64x64xbf16>, vector<16x64xf32> -> vector<16x64xf32>
    %83 = arith.addf %78, %82 : vector<16x64xf32>
    %c0_54 = arith.constant 0 : index
    %c0_55 = arith.constant 0 : index
    %84 = vector.load %arg5[%c0_54, %c0_55] : memref<1x64xf32, #tpu.memory_space<vmem>>, vector<1x64xf32>
    %85 = vector.broadcast %84 : vector<1x64xf32> to vector<16x64xf32>
    %86 = arith.addf %83, %85 : vector<16x64xf32>
    %cst_56 = arith.constant 0.000000e+00 : f32
    %87 = vector.broadcast %cst_56 : f32 to vector<16x64xf32>
    %88 = arith.maximumf %86, %87 : vector<16x64xf32>
    %c0_57 = arith.constant 0 : index
    %c0_58 = arith.constant 0 : index
    %89 = vector.load %arg7[%c0_57, %c0_58] : memref<24x64xf32, #tpu.memory_space<vmem>>, vector<16x64xf32>
    tpu.vector_store %arg7[%c0_57, %c0_58], %88 {strides = array<i32>} : memref<24x64xf32, #tpu.memory_space<vmem>>, vector<16x64xf32>,
    %c0_59 = arith.constant 0 : index
    %c0_60 = arith.constant 0 : index
    %90 = tpu.strided_load %arg7[%c0_59, %c0_60] {strides = array<i32: 2, 1>} : memref<24x64xf32, #tpu.memory_space<vmem>>, vector<8x64xf32>
    %c1_61 = arith.constant 1 : index
    %c0_62 = arith.constant 0 : index
    %91 = tpu.strided_load %arg7[%c1_61, %c0_62] {strides = array<i32: 2, 1>} : memref<24x64xf32, #tpu.memory_space<vmem>>, vector<8x64xf32>
    %92 = arith.maximumf %90, %91 : vector<8x64xf32>
    %93 = arith.truncf %92 : vector<8x64xf32> to vector<8x64xbf16>
    %c0_63 = arith.constant 0 : index
    %c0_64 = arith.constant 0 : index
    %94 = vector.load %arg6[%c0_63, %c0_64] : memref<8x64xbf16, #tpu.memory_space<vmem>>, vector<8x64xbf16>
    tpu.vector_store %arg6[%c0_63, %c0_64], %93 {strides = array<i32>} : memref<8x64xbf16, #tpu.memory_space<vmem>>, vector<8x64xbf16>,
    return
  }
  func.func @transform_0(%arg0: i32) -> (i32, i32) {
    %c0_i32 = arith.constant 0 : i32
    %c0_i32_0 = arith.constant 0 : i32
    return %arg0, %c0_i32 : i32, i32
  }
  func.func @transform_1(%arg0: i32) -> (i32, i32, i32) {
    %c0_i32 = arith.constant 0 : i32
    %c0_i32_0 = arith.constant 0 : i32
    %c0_i32_1 = arith.constant 0 : i32
    %c0_i32_2 = arith.constant 0 : i32
    return %c0_i32, %c0_i32_0, %c0_i32_1 : i32, i32, i32
  }
  func.func @transform_2(%arg0: i32) -> (i32, i32) {
    %c0_i32 = arith.constant 0 : i32
    %c0_i32_0 = arith.constant 0 : i32
    %c0_i32_1 = arith.constant 0 : i32
    return %c0_i32, %c0_i32_0 : i32, i32
  }
  func.func @transform_3(%arg0: i32) -> (i32, i32, i32) {
    %c0_i32 = arith.constant 0 : i32
    %c0_i32_0 = arith.constant 0 : i32
    %c0_i32_1 = arith.constant 0 : i32
    %c0_i32_2 = arith.constant 0 : i32
    return %c0_i32, %c0_i32_0, %c0_i32_1 : i32, i32, i32
  }
  func.func @transform_4(%arg0: i32) -> (i32, i32) {
    %c0_i32 = arith.constant 0 : i32
    %c0_i32_0 = arith.constant 0 : i32
    %c0_i32_1 = arith.constant 0 : i32
    return %c0_i32, %c0_i32_0 : i32, i32
  }
  func.func @transform_5(%arg0: i32) -> (i32, i32) {
    %c0_i32 = arith.constant 0 : i32
    %c0_i32_0 = arith.constant 0 : i32
    return %arg0, %c0_i32 : i32, i32
  }
}

</mosaic_0001>

<llo_original>
// kernel: tpu_custom_call.1
$region0: #{tpu_custom_call.1}
  #allocation0 [shape = 'u32[]', space=smem, size = 0x4, offset = 0x4, fixed_abs, tag = 'smem constant byte address 0x4 - core index']
  #allocation1 [shape = 'u32[72,128]{1,0:T(1,128)}', space=vmem, size = 0x9000, scoped, tag = 'internal scratch']
  #allocation2 [shape = 'f32[24,64]{1,0:T(8,128)}', space=vmem, size = 0x3000, scoped, tag = 'scratch operand']
  %s0 = inlined_call_operand.hbm [shape: bf16[16,64], index: 0, kind: input, shape index: {}]
  %s1 = inlined_call_operand.hbm [shape: bf16[3,64,64], index: 1, kind: input, shape index: {}]
  %s2 = inlined_call_operand.vmem [shape: f32[1,64], index: 2, kind: input, shape index: {}]
  %s3 = inlined_call_operand.hbm [shape: bf16[3,64,64], index: 3, kind: input, shape index: {}]
  %s4 = inlined_call_operand.vmem [shape: f32[1,64], index: 4, kind: input, shape index: {}]
  %s5 = inlined_call_operand.hbm [shape: bf16[8,64], index: 5, kind: output, shape index: {}]
  %s6 = sld [smem:[#allocation0]]
  $region42: #{tpu_custom_call.1} parent=0
    _
  %s8 = ssub.s32 1, %s6
  %s9 = scalar_select 0, %s8, %s6
  $region1: #{tpu_custom_call.1} parent=0
    #allocation3 [shape = 'u8[4096]{0}', space=vmem, size = 0x1000, scoped, tag = 'input window, operand 0, single buffered']
    #allocation4 [shape = 's32[1]{0}', space=sflag, size = 0x4, scoped, tag = 'scoped memory for tpu_custom_call.1']
    #allocation5 [shape = 's32[1]{0}', space=sflag, size = 0x4, scoped, tag = 'scoped memory for tpu_custom_call.1']
    #allocation6 [shape = 'u8[49152]{0}', space=vmem, size = 0xc000, scoped, tag = 'input window, operand 1, single buffered']
    #allocation7 [shape = 's32[1]{0}', space=sflag, size = 0x4, scoped, tag = 'scoped memory for tpu_custom_call.1']
    #allocation8 [shape = 'u8[49152]{0}', space=vmem, size = 0xc000, scoped, tag = 'input window, operand 3, single buffered']
    #allocation9 [shape = 'u8[2048]{0}', space=vmem, size = 0x800, scoped, tag = 'output window, operand 0, single buffered']
    %10 = vsyncpa [#allocation4], 0
    %11 = vsyncpa [#allocation7], 0
    %12 = vsyncpa [#allocation5], 0
    // Predicated region
    $region2: #{tpu_custom_call.1} parent=1 // pred_check
      _
    $region3: #{tpu_custom_call.1} parent=1 // pred_check_branch
      %14 = sbr.rel (0) target = $region5
    $region4: #{tpu_custom_call.1} parent=1 // pred_region
      %16 = vsyncadd [#allocation4], 0
      %s17 = sshll.u32 %s0, 4
      %s18 = int_to_ptr.hbm [resolvable:$true] %s17
      %s19 = sshll.u32 [#allocation3], 4
      %s20 = int_to_ptr.vmem [resolvable:$true] %s19
      %25 = dma.hbm_to_vmem [thread:$0]  %s18, 128, %s20, [#allocation4], 64, 64, 4
    $region5: #{tpu_custom_call.1} parent=1 // pred_fallthru
      _
    // Predicated region
    $region6: #{tpu_custom_call.1} parent=1 // pred_check
      _
    $region7: #{tpu_custom_call.1} parent=1 // pred_check_branch
      %27 = sbr.rel (0) target = $region9
    $region8: #{tpu_custom_call.1} parent=1 // pred_region
      %29 = vsyncadd [#allocation7], 0
      %s30 = sshll.u32 %s1, 4
      %s31 = int_to_ptr.hbm [resolvable:$true] %s30
      %s32 = sshll.u32 [#allocation6], 4
      %s33 = int_to_ptr.vmem [resolvable:$true] %s32
      %38 = dma.hbm_to_vmem [thread:$0]  %s31, 1536, %s33, [#allocation7], 64, 64, 4
    $region9: #{tpu_custom_call.1} parent=1 // pred_fallthru
      _
    // Predicated region
    $region10: #{tpu_custom_call.1} parent=1 // pred_check
      _
    $region11: #{tpu_custom_call.1} parent=1 // pred_check_branch
      %40 = sbr.rel (0) target = $region13
    $region12: #{tpu_custom_call.1} parent=1 // pred_region
      _
    $region13: #{tpu_custom_call.1} parent=1 // pred_fallthru
      _
    // Predicated region
    $region14: #{tpu_custom_call.1} parent=1 // pred_check
      _
    $region15: #{tpu_custom_call.1} parent=1 // pred_check_branch
      %42 = sbr.rel (0) target = $region17
    $region16: #{tpu_custom_call.1} parent=1 // pred_region
      %44 = vsyncadd [#allocation7], 0
      %s45 = sshll.u32 %s3, 4
      %s46 = int_to_ptr.hbm [resolvable:$true] %s45
      %s47 = sshll.u32 [#allocation8], 4
      %s48 = int_to_ptr.vmem [resolvable:$true] %s47
      %53 = dma.hbm_to_vmem [thread:$0]  %s46, 1536, %s48, [#allocation7], 64, 64, 4
    $region17: #{tpu_custom_call.1} parent=1 // pred_fallthru
      _
    // Predicated region
    $region18: #{tpu_custom_call.1} parent=1 // pred_check
      _
    $region19: #{tpu_custom_call.1} parent=1 // pred_check_branch
      %55 = sbr.rel (0) target = $region21
    $region20: #{tpu_custom_call.1} parent=1 // pred_region
      _
    $region21: #{tpu_custom_call.1} parent=1 // pred_fallthru
      _
    // Predicated region
    $region22: #{tpu_custom_call.1} parent=1 // pred_check
      _
    $region23: #{tpu_custom_call.1} parent=1 // pred_check_branch
      %57 = sbr.rel (0) target = $region25
    $region24: #{tpu_custom_call.1} parent=1 // pred_region
      %59 = dma.done [#allocation4], 128
    $region25: #{tpu_custom_call.1} parent=1 // pred_fallthru
      _
    // Predicated region
    $region26: #{tpu_custom_call.1} parent=1 // pred_check
      _
    $region27: #{tpu_custom_call.1} parent=1 // pred_check_branch
      %61 = sbr.rel (0) target = $region29
    $region28: #{tpu_custom_call.1} parent=1 // pred_region
      %63 = dma.done [#allocation7], 1536
    $region29: #{tpu_custom_call.1} parent=1 // pred_fallthru
      _
    // Predicated region
    $region30: #{tpu_custom_call.1} parent=1 // pred_check
      _
    $region31: #{tpu_custom_call.1} parent=1 // pred_check_branch
      %65 = sbr.rel (0) target = $region33
    $region32: #{tpu_custom_call.1} parent=1 // pred_region
      %67 = dma.done [#allocation7], 1536
    $region33: #{tpu_custom_call.1} parent=1 // pred_fallthru
      _
    %v69 = vlaneseq
    %v70 = vshrl.u32 %v69, 7
    %v71 = vadd.s32 %v70, 8
    %vm72 = vcmp.lt.s32.totalorder %v70, 0
    %v73 = vsub.s32 0, %v70
    %v74 = vsel %vm72, %v73, %v70
    %v75 = vshrl.u32 %v74, 4
    %v76 = vand.u32 %v74, 15
    %v77 = vsub.s32 0, %v76
    %v78 = vsel %vm72, %v77, %v76
    %vm79 = vcmp.lt.s32.totalorder %v71, 0
    %v80 = vsub.s32 0, %v71
    %v81 = vsel %vm79, %v80, %v71
    %v82 = vshrl.u32 %v81, 4
    %v83 = vand.u32 %v81, 15
    %v84 = vsub.s32 0, %v83
    %v85 = vsel %vm79, %v84, %v83
    %vm86 = vcmp.ne.s32.totalorder %v78, 0
    %vm87 = vcmp.ne.s32.totalorder %v85, 0
    %vm88 = vcmp.lt.s32.totalorder %v78, 0
    %vm89 = vcmp.lt.s32.totalorder %v85, 0
    %vm90 = vmand %vm88, %vm86
    %vm91 = vmand %vm89, %vm87
    %v92 = vadd.s32 %v78, 16
    %v93 = vadd.s32 %v85, 16
    %v94 = vsel %vm90, %v92, %v78
    %v95 = vsel %vm91, %v93, %v85
    %vm96 = vcmp.ne.s32.totalorder %v94, 0
    %vm97 = vcmp.ne.s32.totalorder %v95, 0
    %vm98 = vcmp.ne.s32.totalorder %v94, 15
    %vm99 = vcmp.ne.s32.totalorder %v95, 15
    %v100 = vld [vmem:[#allocation3] sm:$0xf]
    %v101 = vld [vmem:[#allocation3 + $0x4] sm:$0xf]
    %vm102 = vcmask 516096
    %103 = vst.msk [vmem:[#allocation2] sm:$0x1] %vm102, 0.0
    %v104 = vunpack.c.l.bf16 %v100
    %v105 = vunpack.c.l.bf16 %v101
    %vm106 = vcmask 523264
    %107 = vst.msk [vmem:[#allocation2 + $0x1] sm:$0xff] %vm106, %v104
    %108 = vst.msk [vmem:[#allocation2 + $0x9] sm:$0xff] %vm106, %v105
    %109 = vst.msk [vmem:[#allocation2 + $0x11] sm:$0x1] %vm102, 0.0
    %v110 = vld [vmem:[#allocation2] sm:$0xff]
    %v111 = vld [vmem:[#allocation2 + $0x8] sm:$0xff]
    %v112 = vsel %vm96, 1, 0
    %v113 = vsel %vm97, 1, 0
    %vm114 = vcmp.eq.s32.totalorder %v112, 1
    %vm115 = vcmp.eq.s32.totalorder %v113, 1
    %v116 = vsel %vm114, %v110, 0.0
    %v117 = vsel %vm115, %v111, 0.0
    %v118 = vld [vmem:[#allocation2 + $0x2] sm:$0xff]
    %v119 = vld [vmem:[#allocation2 + $0xa] sm:$0xff]
    %v120 = vsel %vm98, 1, 0
    %v121 = vsel %vm99, 1, 0
    %vm122 = vcmp.eq.s32.totalorder %v120, 1
    %vm123 = vcmp.eq.s32.totalorder %v121, 1
    %v124 = vsel %vm122, %v118, 0.0
    %v125 = vsel %vm123, %v119, 0.0
    %v126 = vpack.c.bf16 %v117, %v116
    %v127 = vld [vmem:[#allocation6] sm:$0xf]
    %v128 = vld [vmem:[#allocation6 + $0x4] sm:$0xf]
    %v129 = vld [vmem:[#allocation6 + $0x8] sm:$0xf]
    %v130 = vld [vmem:[#allocation6 + $0xc] sm:$0xf]
    %v131 = vld [vmem:[#allocation6 + $0x10] sm:$0xf]
    %v132 = vld [vmem:[#allocation6 + $0x14] sm:$0xf]
    %v133 = vld [vmem:[#allocation6 + $0x18] sm:$0xf]
    %v134 = vld [vmem:[#allocation6 + $0x1c] sm:$0xf]
    %s135 = scalar_lea.vmem [#allocation6], 32
    %v136 = vld [vmem:[%s135] sm:$0xf]
    %v137 = vld [vmem:[%s135 + $0x4] sm:$0xf]
    %v138 = vld [vmem:[%s135 + $0x8] sm:$0xf]
    %v139 = vld [vmem:[%s135 + $0xc] sm:$0xf]
    %v140 = vld [vmem:[%s135 + $0x10] sm:$0xf]
    %v141 = vld [vmem:[%s135 + $0x14] sm:$0xf]
    %v142 = vld [vmem:[%s135 + $0x18] sm:$0xf]
    %v143 = vld [vmem:[%s135 + $0x1c] sm:$0xf]
    %v146 = vunpack.c.l.b16 %v100
    %v147 = vunpack.c.l.b16 %v101
    %v148 = vpack.c.b16 %v147, %v146
    %v157 = vunpack.c.l.b16 %v136
    %v158 = vunpack.c.l.b16 %v137
    %v159 = vunpack.c.l.b16 %v138
    %v160 = vunpack.c.l.b16 %v139
    %v161 = vunpack.c.l.b16 %v140
    %v162 = vunpack.c.l.b16 %v141
    %v163 = vunpack.c.l.b16 %v142
    %v164 = vunpack.c.l.b16 %v143
    %v165 = vpack.c.b16 %v158, %v157
    %v166 = vpack.c.b16 %v160, %v159
    %v167 = vpack.c.b16 %v162, %v161
    %v168 = vpack.c.b16 %v164, %v163
    %v174 = vsel %vm106, %v148, 0
    %176 = vmatpush.bf16.msra.mxu0 0
    %177 = vmatpush.bf16.msra.mxu0 0
    %178 = vmatpush.bf16.msra.mxu0 0
    %179 = vmatpush.bf16.msra.mxu0 0
    %180 = vmatpush.bf16.msra.mxu0 %v168
    %181 = vmatpush.bf16.msra.mxu0 %v167
    %182 = vmatpush.bf16.msra.mxu0 %v166
    %183 = vmatpush.bf16.msra.mxu0 %v165
    %184 = vmatmul.bf16.gmra.mxu0 %v174
    %v185 = vpop.f32.mrf.mxu0
    %v186 = vadd.f32 0.0, %v185
    %v187 = vpop.f32.mrf.mxu0
    %v188 = vadd.f32 0.0, %v187
    %189 = vdwg.mxu0
    %v198 = vunpack.c.l.b16 %v127
    %v199 = vunpack.c.l.b16 %v128
    %v200 = vunpack.c.l.b16 %v129
    %v201 = vunpack.c.l.b16 %v130
    %v202 = vunpack.c.l.b16 %v131
    %v203 = vunpack.c.l.b16 %v132
    %v204 = vunpack.c.l.b16 %v133
    %v205 = vunpack.c.l.b16 %v134
    %v206 = vpack.c.b16 %v199, %v198
    %v207 = vpack.c.b16 %v201, %v200
    %v208 = vpack.c.b16 %v203, %v202
    %v209 = vpack.c.b16 %v205, %v204
    %v215 = vsel %vm106, %v126, 0
    %217 = vmatpush.bf16.msra.mxu0 0
    %218 = vmatpush.bf16.msra.mxu0 0
    %219 = vmatpush.bf16.msra.mxu0 0
    %220 = vmatpush.bf16.msra.mxu0 0
    %221 = vmatpush.bf16.msra.mxu0 %v209
    %222 = vmatpush.bf16.msra.mxu0 %v208
    %223 = vmatpush.bf16.msra.mxu0 %v207
    %224 = vmatpush.bf16.msra.mxu0 %v206
    %225 = vmatmul.bf16.gmra.mxu0 %v215
    %v226 = vpop.f32.mrf.mxu0
    %v227 = vadd.f32 %v186, %v226
    %v228 = vpop.f32.mrf.mxu0
    %v229 = vadd.f32 %v188, %v228
    %230 = vdwg.mxu0
    %v231 = vpack.c.bf16 %v125, %v124
    %s232 = scalar_lea.vmem [#allocation6], 64
    %v233 = vld [vmem:[%s232] sm:$0xf]
    %v234 = vld [vmem:[%s232 + $0x4] sm:$0xf]
    %v235 = vld [vmem:[%s232 + $0x8] sm:$0xf]
    %v236 = vld [vmem:[%s232 + $0xc] sm:$0xf]
    %v237 = vld [vmem:[%s232 + $0x10] sm:$0xf]
    %v238 = vld [vmem:[%s232 + $0x14] sm:$0xf]
    %v239 = vld [vmem:[%s232 + $0x18] sm:$0xf]
    %v240 = vld [vmem:[%s232 + $0x1c] sm:$0xf]
    %v249 = vunpack.c.l.b16 %v233
    %v250 = vunpack.c.l.b16 %v234
    %v251 = vunpack.c.l.b16 %v235
    %v252 = vunpack.c.l.b16 %v236
    %v253 = vunpack.c.l.b16 %v237
    %v254 = vunpack.c.l.b16 %v238
    %v255 = vunpack.c.l.b16 %v239
    %v256 = vunpack.c.l.b16 %v240
    %v257 = vpack.c.b16 %v250, %v249
    %v258 = vpack.c.b16 %v252, %v251
    %v259 = vpack.c.b16 %v254, %v253
    %v260 = vpack.c.b16 %v256, %v255
    %v266 = vsel %vm106, %v231, 0
    %268 = vmatpush.bf16.msra.mxu0 0
    %269 = vmatpush.bf16.msra.mxu0 0
    %270 = vmatpush.bf16.msra.mxu0 0
    %271 = vmatpush.bf16.msra.mxu0 0
    %272 = vmatpush.bf16.msra.mxu0 %v260
    %273 = vmatpush.bf16.msra.mxu0 %v259
    %274 = vmatpush.bf16.msra.mxu0 %v258
    %275 = vmatpush.bf16.msra.mxu0 %v257
    %276 = vmatmul.bf16.gmra.mxu0 %v266
    %v277 = vpop.f32.mrf.mxu0
    %v278 = vadd.f32 0.0, %v277
    %v279 = vpop.f32.mrf.mxu0
    %v280 = vadd.f32 0.0, %v279
    %281 = vdwg.mxu0
    %v282 = vadd.f32 %v227, %v278
    %v283 = vadd.f32 %v229, %v280
    %v284 = vld [vmem:[%s2] sm:$0x1]
    %v286 = vperm.slane %v284, 0
    %v288 = vadd.f32 %v282, %v286
    %v289 = vadd.f32 %v283, %v286
    %v290 = vmax.f32 %v288, 0.0
    %v291 = vmax.f32 %v289, 0.0
    %v292 = vpack.c.bf16 %v290, %v290
    %v293 = vpack.c.bf16 %v291, %v291
    %294 = vst.msk [vmem:[#allocation2] sm:$0x1] %vm102, 0.0
    %v295 = vunpack.c.l.bf16 %v292
    %v296 = vunpack.c.l.bf16 %v293
    %297 = vst.msk [vmem:[#allocation2 + $0x1] sm:$0xff] %vm106, %v295
    %298 = vst.msk [vmem:[#allocation2 + $0x9] sm:$0xff] %vm106, %v296
    %299 = vst.msk [vmem:[#allocation2 + $0x11] sm:$0x1] %vm102, 0.0
    %v300 = vld [vmem:[#allocation2] sm:$0xff]
    %v301 = vld [vmem:[#allocation2 + $0x8] sm:$0xff]
    %v302 = vsel %vm114, %v300, 0.0
    %v303 = vsel %vm115, %v301, 0.0
    %v304 = vld [vmem:[#allocation2 + $0x2] sm:$0xff]
    %v305 = vld [vmem:[#allocation2 + $0xa] sm:$0xff]
    %v306 = vsel %vm122, %v304, 0.0
    %v307 = vsel %vm123, %v305, 0.0
    %v308 = vpack.c.bf16 %v303, %v302
    %v309 = vld [vmem:[#allocation8] sm:$0xf]
    %v310 = vld [vmem:[#allocation8 + $0x4] sm:$0xf]
    %v311 = vld [vmem:[#allocation8 + $0x8] sm:$0xf]
    %v312 = vld [vmem:[#allocation8 + $0xc] sm:$0xf]
    %v313 = vld [vmem:[#allocation8 + $0x10] sm:$0xf]
    %v314 = vld [vmem:[#allocation8 + $0x14] sm:$0xf]
    %v315 = vld [vmem:[#allocation8 + $0x18] sm:$0xf]
    %v316 = vld [vmem:[#allocation8 + $0x1c] sm:$0xf]
    %s317 = scalar_lea.vmem [#allocation8], 32
    %v318 = vld [vmem:[%s317] sm:$0xf]
    %v319 = vld [vmem:[%s317 + $0x4] sm:$0xf]
    %v320 = vld [vmem:[%s317 + $0x8] sm:$0xf]
    %v321 = vld [vmem:[%s317 + $0xc] sm:$0xf]
    %v322 = vld [vmem:[%s317 + $0x10] sm:$0xf]
    %v323 = vld [vmem:[%s317 + $0x14] sm:$0xf]
    %v324 = vld [vmem:[%s317 + $0x18] sm:$0xf]
    %v325 = vld [vmem:[%s317 + $0x1c] sm:$0xf]
    %v328 = vunpack.c.l.b16 %v292
    %v329 = vunpack.c.l.b16 %v293
    %v330 = vpack.c.b16 %v329, %v328
    %v339 = vunpack.c.l.b16 %v318
    %v340 = vunpack.c.l.b16 %v319
    %v341 = vunpack.c.l.b16 %v320
    %v342 = vunpack.c.l.b16 %v321
    %v343 = vunpack.c.l.b16 %v322
    %v344 = vunpack.c.l.b16 %v323
    %v345 = vunpack.c.l.b16 %v324
    %v346 = vunpack.c.l.b16 %v325
    %v347 = vpack.c.b16 %v340, %v339
    %v348 = vpack.c.b16 %v342, %v341
    %v349 = vpack.c.b16 %v344, %v343
    %v350 = vpack.c.b16 %v346, %v345
    %v356 = vsel %vm106, %v330, 0
    %358 = vmatpush.bf16.msra.mxu0 0
    %359 = vmatpush.bf16.msra.mxu0 0
    %360 = vmatpush.bf16.msra.mxu0 0
    %361 = vmatpush.bf16.msra.mxu0 0
    %362 = vmatpush.bf16.msra.mxu0 %v350
    %363 = vmatpush.bf16.msra.mxu0 %v349
    %364 = vmatpush.bf16.msra.mxu0 %v348
    %365 = vmatpush.bf16.msra.mxu0 %v347
    %366 = vmatmul.bf16.gmra.mxu0 %v356
    %v367 = vpop.f32.mrf.mxu0
    %v368 = vadd.f32 0.0, %v367
    %v369 = vpop.f32.mrf.mxu0
    %v370 = vadd.f32 0.0, %v369
    %371 = vdwg.mxu0
    %v380 = vunpack.c.l.b16 %v309
    %v381 = vunpack.c.l.b16 %v310
    %v382 = vunpack.c.l.b16 %v311
    %v383 = vunpack.c.l.b16 %v312
    %v384 = vunpack.c.l.b16 %v313
    %v385 = vunpack.c.l.b16 %v314
    %v386 = vunpack.c.l.b16 %v315
    %v387 = vunpack.c.l.b16 %v316
    %v388 = vpack.c.b16 %v381, %v380
    %v389 = vpack.c.b16 %v383, %v382
    %v390 = vpack.c.b16 %v385, %v384
    %v391 = vpack.c.b16 %v387, %v386
    %v397 = vsel %vm106, %v308, 0
    %399 = vmatpush.bf16.msra.mxu0 0
    %400 = vmatpush.bf16.msra.mxu0 0
    %401 = vmatpush.bf16.msra.mxu0 0
    %402 = vmatpush.bf16.msra.mxu0 0
    %403 = vmatpush.bf16.msra.mxu0 %v391
    %404 = vmatpush.bf16.msra.mxu0 %v390
    %405 = vmatpush.bf16.msra.mxu0 %v389
    %406 = vmatpush.bf16.msra.mxu0 %v388
    %407 = vmatmul.bf16.gmra.mxu0 %v397
    %v408 = vpop.f32.mrf.mxu0
    %v409 = vadd.f32 %v368, %v408
    %v410 = vpop.f32.mrf.mxu0
    %v411 = vadd.f32 %v370, %v410
    %412 = vdwg.mxu0
    %v413 = vpack.c.bf16 %v307, %v306
    %s414 = scalar_lea.vmem [#allocation8], 64
    %v415 = vld [vmem:[%s414] sm:$0xf]
    %v416 = vld [vmem:[%s414 + $0x4] sm:$0xf]
    %v417 = vld [vmem:[%s414 + $0x8] sm:$0xf]
    %v418 = vld [vmem:[%s414 + $0xc] sm:$0xf]
    %v419 = vld [vmem:[%s414 + $0x10] sm:$0xf]
    %v420 = vld [vmem:[%s414 + $0x14] sm:$0xf]
    %v421 = vld [vmem:[%s414 + $0x18] sm:$0xf]
    %v422 = vld [vmem:[%s414 + $0x1c] sm:$0xf]
    %v431 = vunpack.c.l.b16 %v415
    %v432 = vunpack.c.l.b16 %v416
    %v433 = vunpack.c.l.b16 %v417
    %v434 = vunpack.c.l.b16 %v418
    %v435 = vunpack.c.l.b16 %v419
    %v436 = vunpack.c.l.b16 %v420
    %v437 = vunpack.c.l.b16 %v421
    %v438 = vunpack.c.l.b16 %v422
    %v439 = vpack.c.b16 %v432, %v431
    %v440 = vpack.c.b16 %v434, %v433
    %v441 = vpack.c.b16 %v436, %v435
    %v442 = vpack.c.b16 %v438, %v437
    %v448 = vsel %vm106, %v413, 0
    %450 = vmatpush.bf16.msra.mxu0 0
    %451 = vmatpush.bf16.msra.mxu0 0
    %452 = vmatpush.bf16.msra.mxu0 0
    %453 = vmatpush.bf16.msra.mxu0 0
    %454 = vmatpush.bf16.msra.mxu0 %v442
    %455 = vmatpush.bf16.msra.mxu0 %v441
    %456 = vmatpush.bf16.msra.mxu0 %v440
    %457 = vmatpush.bf16.msra.mxu0 %v439
    %458 = vmatmul.bf16.gmra.mxu0 %v448
    %v459 = vpop.f32.mrf.mxu0
    %v460 = vadd.f32 0.0, %v459
    %v461 = vpop.f32.mrf.mxu0
    %v462 = vadd.f32 0.0, %v461
    %463 = vdwg.mxu0
    %v464 = vadd.f32 %v409, %v460
    %v465 = vadd.f32 %v411, %v462
    %v466 = vld [vmem:[%s4] sm:$0x1]
    %v468 = vperm.slane %v466, 0
    %v470 = vadd.f32 %v464, %v468
    %v471 = vadd.f32 %v465, %v468
    %v472 = vmax.f32 %v470, 0.0
    %v473 = vmax.f32 %v471, 0.0
    %474 = vst.msk [vmem:[#allocation2] sm:$0xff] %vm106, %v472
    %475 = vst.msk [vmem:[#allocation2 + $0x8] sm:$0xff] %vm106, %v473
    %v476 = vld [vmem:[#allocation2] ss:$2 sm:$0xff]
    %s477 = scalar_lea.vmem [#allocation2], 1
    %v478 = vld [vmem:[%s477] ss:$2 sm:$0xff]
    %v479 = vmax.f32 %v476, %v478
    %v480 = vpack.c.bf16 %v479, %v479
    %vm481 = vcmask 519168
    %482 = vst.msk [vmem:[#allocation9] sm:$0xf] %vm481, %v480
    // Predicated region
    $region34: #{tpu_custom_call.1} parent=1 // pred_check
      _
    $region35: #{tpu_custom_call.1} parent=1 // pred_check_branch
      %484 = sbr.rel (0) target = $region37
    $region36: #{tpu_custom_call.1} parent=1 // pred_region
      %486 = vsyncadd [#allocation5], 0
      %s488 = sshll.u32 [#allocation9], 4
      %s489 = int_to_ptr.vmem [resolvable:$true] %s488
      %s490 = sshll.u32 %s5, 4
      %s491 = int_to_ptr.hbm [resolvable:$true] %s490
      %493 = dma.vmem_to_hbm [thread:$0]  %s489, 64, %s491, [#allocation5]
    $region37: #{tpu_custom_call.1} parent=1 // pred_fallthru
      _
    // Predicated region
    $region38: #{tpu_custom_call.1} parent=1 // pred_check
      _
    $region39: #{tpu_custom_call.1} parent=1 // pred_check_branch
      %495 = sbr.rel (0) target = $region41
    $region40: #{tpu_custom_call.1} parent=1 // pred_region
      %497 = dma.done [#allocation5], 64
    $region41: #{tpu_custom_call.1} parent=1 // pred_fallthru
      _
    %498 = vsyncpa [#allocation4], 1
    %499 = vsyncpa [#allocation7], 1
    %500 = vsyncpa [#allocation5], 1

</llo_original>
